<compile_context>
chip_gen: v7x
topology: tpu7x:2x2x1
jax: 0.10.0
libtpu: 0.0.40
codegen_flags: <defaults>
</compile_context>

<pallas_src>
import functools

import jax
import jax.numpy as jnp
from jax.experimental import pallas as pl
from jax.experimental.pallas import tpu as pltpu

LANE = 128                      # TPU vreg lane width
SUBLANE = 8                     # f32 sublanes per vreg (accumulation is f32)
TILE_BYTES = 4 * 1024 * 1024    # HBM bytes per input block per grid step
VMEM_LIMIT_BYTES = 32 * 1024 * 1024  # 2 in x 2 buf x 4 MiB = 16 MiB + slack


def _round_up(x: int, m: int) -> int:
    return ((x + m - 1) // m) * m


def _num_tensorcores() -> int:
    """Best-effort TensorCores per chip (2 on v7x, 1 on v5e/v6e).

    Falls back to 1 (safe: serial split, no clamped duplicate blocks)."""
    try:
        info = pltpu.get_tpu_info()
        for attr in ("num_tensorcores", "tensorcores_per_chip", "num_cores",
                     "core_count", "cores_per_chip"):
            n = getattr(info, attr, None)
            if isinstance(n, int) and 1 <= n <= 8:
                return n
    except Exception:
        pass
    try:
        kind = jax.devices()[0].device_kind.lower()
        if "v7" in kind:
            return 2
    except Exception:
        pass
    return 1


def _mse_sum_kernel(x_ref, t_ref, out_ref, *, tile_rows: int, k_acc: int,
                    blocks_per_split: int, total_blocks: int,
                    valid_rows: int, mask_rows: bool):
    """Accumulate per-split partial sums of (x - t)^2 into a (1, K, 8, 128)
    output block held resident across the (arbitrary) reduction axis."""
    i = pl.program_id(1)

    @pl.when(i == 0)
    def _():
        out_ref[...] = jnp.zeros_like(out_ref)

    # f32 accumulation regardless of input dtype (deviates from PyTorch's
    # native-dtype mse_loss for low-precision inputs — strictly more accurate).
    d = x_ref[...].astype(jnp.float32) - t_ref[...].astype(jnp.float32)
    sq = d * d

    def _accumulate(vals):
        # K independent (8,128) accumulators: shorter dependent-add chains so
        # the VALU work stays pipelined and DMA remains the bottleneck (v7x).
        partial = jnp.sum(
            vals.reshape(tile_rows // (k_acc * SUBLANE), k_acc, SUBLANE, LANE),
            axis=0)
        out_ref[...] += partial[None]

    if not mask_rows:
        _accumulate(sq)
    else:
        s = pl.program_id(0)
        blk = s * blocks_per_split + i          # logical block index

        @pl.when(blk < total_blocks - 1)        # interior blocks: no masking
        def _():
            _accumulate(sq)

        @pl.when(blk >= total_blocks - 1)       # tail / clamped blocks only
        def _():
            row_start = blk * tile_rows
            row_ids = row_start + jax.lax.broadcasted_iota(
                jnp.int32, (tile_rows, 1), 0)
            # Keep this a select: OOB rows may contain garbage (NaN/Inf).
            # Clamped duplicate blocks (blk >= total_blocks) get a logical
            # row_start past valid_rows and contribute exactly zero.
            _accumulate(jnp.where(row_ids < valid_rows, sq, 0.0))


def content_loss_forward(x: jax.Array, target: jax.Array, *,
                         tile_bytes: int = TILE_BYTES):
    """Mirror of ContentLoss.forward: returns (input, loss) where
    loss == F.mse_loss(input, target) (mean over all elements)."""
    assert x.shape == target.shape, "input/target shape mismatch"
    total = x.size
    itemsize = jnp.dtype(x.dtype).itemsize

    flat_x = x.reshape(-1)
    flat_t = target.reshape(-1)

    rows = total // LANE            # lane-aligned prefix handled by the kernel
    tail = total - rows * LANE      # <128 leftover elements

    # Tiny tail (and tiny-input) contribution in plain JAX: avoids the
    # full-array pad copy that would roughly triple HBM traffic.
    if tail or rows == 0:
        xt = flat_x[rows * LANE:].astype(jnp.float32)
        tt = flat_t[rows * LANE:].astype(jnp.float32)
        dt = xt - tt
        tail_sum = jnp.sum(dt * dt)
    else:
        tail_sum = jnp.float32(0.0)

    if rows == 0:   # entire array is smaller than one lane row
        return x, tail_sum / jnp.float32(total)

    if tail:
        x2d = flat_x[: rows * LANE].reshape(rows, LANE)
        t2d = flat_t[: rows * LANE].reshape(rows, LANE)
    else:
        x2d = flat_x.reshape(rows, LANE)
        t2d = flat_t.reshape(rows, LANE)

    # Sublane granularity of the native dtype (f32:8, bf16:16, int8/fp8:32).
    sublane_mult = SUBLANE * max(1, 4 // max(1, itemsize))
    # Byte budget -> rows: constant HBM bytes per grid step across dtypes.
    budget_rows = max(sublane_mult, tile_bytes // (LANE * itemsize))
    budget_rows = _round_up(budget_rows, sublane_mult)
    tile_rows = min(budget_rows, _round_up(rows, sublane_mult))

    # Number of independent f32 accumulators (compile-time constant).
    k_acc = 1
    for cand in (8, 4, 2):
        if tile_rows % (cand * SUBLANE) == 0:
            k_acc = cand
            break

    total_blocks = pl.cdiv(rows, tile_rows)
    num_splits = min(_num_tensorcores(), total_blocks)   # one chunk per TC
    blocks_per_split = pl.cdiv(total_blocks, num_splits)
    padded_blocks = num_splits * blocks_per_split
    mask_rows = (rows % tile_rows != 0) or (padded_blocks != total_blocks)

    if padded_blocks == total_blocks:
        def in_map(s, i):
            return (s * blocks_per_split + i, 0)
    else:
        def in_map(s, i):
            # Clamp logical blocks past the end onto the last real block; the
            # in-kernel row mask zeroes their contribution.
            return (jnp.minimum(s * blocks_per_split + i, total_blocks - 1), 0)

    kernel = functools.partial(
        _mse_sum_kernel,
        tile_rows=tile_rows,
        k_acc=k_acc,
        blocks_per_split=blocks_per_split,
        total_blocks=total_blocks,
        valid_rows=rows,
        mask_rows=mask_rows,
    )

    partials = pl.pallas_call(
        kernel,
        out_shape=jax.ShapeDtypeStruct(
            (num_splits, k_acc, SUBLANE, LANE), jnp.float32),
        grid_spec=pltpu.PrefetchScalarGridSpec(
            num_scalar_prefetch=0,
            grid=(num_splits, blocks_per_split),
            in_specs=[
                pl.BlockSpec((tile_rows, LANE), in_map),
                pl.BlockSpec((tile_rows, LANE), in_map),
            ],
            out_specs=pl.BlockSpec((1, k_acc, SUBLANE, LANE),
                                   lambda s, i: (s, 0, 0, 0)),
        ),
        compiler_params=pltpu.CompilerParams(
            dimension_semantics=("parallel", "arbitrary"),
            vmem_limit_bytes=VMEM_LIMIT_BYTES,
        ),
        cost_estimate=pl.CostEstimate(
            flops=3 * total,
            transcendentals=0,
            bytes_accessed=2 * total * itemsize,
        ),
    )(x2d, t2d)

    # Single tiny cross-lane reduction + mean, once, outside the hot loop.
    loss = (jnp.sum(partials) + tail_sum) / jnp.float32(total)

    # ContentLoss.forward returns the input unchanged (loss is a side value).
    # TODO(synk): PyTorch stores the loss on `self.loss`; here it is returned.
    return x, loss


if __name__ == "__main__":
    key = jax.random.PRNGKey(0)

    def ref_mse(a, b):
        return jnp.mean((a.astype(jnp.float32) - b.astype(jnp.float32)) ** 2)

    # --- Test 1: canonical small NCHW case (aligned, single block, fast path).
    k1, k2, key = jax.random.split(key, 3)
    shape1 = (2, 4, 16, 16)
    x1 = jax.random.normal(k1, shape1, dtype=jnp.float32)
    t1 = jax.random.normal(k2, shape1, dtype=jnp.float32)
    out1, loss1 = content_loss_forward(x1, t1)
    jax.block_until_ready((out1, loss1))
    assert jnp.allclose(loss1, ref_mse(x1, t1), rtol=1e-5, atol=1e-6)
    assert jnp.array_equal(out1, x1)

    # --- Test 2: non-lane-aligned element count (pad-free tail + masked block).
    k1, k2, key = jax.random.split(key, 3)
    shape2 = (2, 3, 20, 24)  # 2880 elements: 22 full lane rows + 64-elem tail
    x2 = jax.random.normal(k1, shape2, dtype=jnp.float32)
    t2 = jax.random.normal(k2, shape2, dtype=jnp.float32)
    out2, loss2 = content_loss_forward(x2, t2)
    jax.block_until_ready((out2, loss2))
    assert jnp.allclose(loss2, ref_mse(x2, t2), rtol=1e-5, atol=1e-6)
    assert jnp.array_equal(out2, x2)

    # --- Test 3: multi-block grid with ragged last block (small tile override
    #             so the split / clamp / gated-mask paths are exercised).
    k1, k2, key = jax.random.split(key, 3)
    shape3 = (2, 3, 50, 128)  # 38400 elements -> 300 rows -> 3 blocks of 128
    x3 = jax.random.normal(k1, shape3, dtype=jnp.float32)
    t3 = jax.random.normal(k2, shape3, dtype=jnp.float32)
    out3, loss3 = content_loss_forward(x3, t3, tile_bytes=64 * 1024)
    jax.block_until_ready((out3, loss3))
    assert jnp.allclose(loss3, ref_mse(x3, t3), rtol=1e-5, atol=1e-6)
    assert jnp.array_equal(out3, x3)

    # --- Test 4: bf16 inputs (dtype-scaled tiles, f32 accumulation).
    k1, k2, key = jax.random.split(key, 3)
    x4 = jax.random.normal(k1, shape1, dtype=jnp.bfloat16)
    t4 = jax.random.normal(k2, shape1, dtype=jnp.bfloat16)
    out4, loss4 = content_loss_forward(x4, t4)
    jax.block_until_ready((out4, loss4))
    assert jnp.allclose(loss4, ref_mse(x4, t4), rtol=1e-3, atol=1e-4)
    assert jnp.array_equal(out4, x4)

    print("KERNEL_OK")
</pallas_src>

<mosaic_0001>
module attributes {stable_mosaic.version = 11 : i64} {
  func.func @_mse_sum_kernel(%arg0: i32, %arg1: i32, %arg2: memref<16x128xf32, #tpu.memory_space<vmem>>, %arg3: memref<16x128xf32, #tpu.memory_space<vmem>>, %arg4: memref<1x2x8x128xf32, #tpu.memory_space<vmem>>) attributes {dimension_semantics = [#tpu.dimension_semantics<parallel>, #tpu.dimension_semantics<arbitrary>], iteration_bounds = array<i64: 1, 1>, scalar_prefetch = 0 : i64, scratch_operands = 0 : i64, tpu.core_type = #tpu.core_type<tc>, window_params = [{transform_indices = @transform_0, window_bounds = array<i64: 16, 128>}, {transform_indices = @transform_1, window_bounds = array<i64: 16, 128>}, {transform_indices = @transform_2, window_bounds = array<i64: 1, 2, 8, 128>}]} {
    %c0_i32 = arith.constant 0 : i32
    %0 = arith.cmpi eq, %arg1, %c0_i32 : i32
    %1 = arith.extui %0 : i1 to i32
    %c0_i32_0 = arith.constant 0 : i32
    %2 = arith.cmpi ne, %1, %c0_i32_0 : i32
    scf.if %2 {
      %cst_12 = arith.constant 0.000000e+00 : f32
      %13 = vector.broadcast %cst_12 : f32 to vector<1x2x8x128xf32>
      %c0_13 = arith.constant 0 : index
      %c0_14 = arith.constant 0 : index
      %c0_15 = arith.constant 0 : index
      %c0_16 = arith.constant 0 : index
      %14 = vector.load %arg4[%c0_13, %c0_14, %c0_15, %c0_16] : memref<1x2x8x128xf32, #tpu.memory_space<vmem>>, vector<1x2x8x128xf32>
      tpu.vector_store %arg4[%c0_13, %c0_14, %c0_15, %c0_16], %13 {strides = array<i32>} : memref<1x2x8x128xf32, #tpu.memory_space<vmem>>, vector<1x2x8x128xf32>,
    } else {
    }
    %c0 = arith.constant 0 : index
    %c0_1 = arith.constant 0 : index
    %3 = vector.load %arg2[%c0, %c0_1] : memref<16x128xf32, #tpu.memory_space<vmem>>, vector<16x128xf32>
    %c0_2 = arith.constant 0 : index
    %c0_3 = arith.constant 0 : index
    %4 = vector.load %arg3[%c0_2, %c0_3] : memref<16x128xf32, #tpu.memory_space<vmem>>, vector<16x128xf32>
    %5 = arith.subf %3, %4 : vector<16x128xf32>
    %6 = arith.mulf %5, %5 : vector<16x128xf32>
    %7 = vector.shape_cast %6 : vector<16x128xf32> to vector<1x2x8x128xf32>
    %cst = arith.constant dense<0.000000e+00> : vector<2x8x128xf32>
    %8 = vector.multi_reduction <add>, %7, %cst [0] : vector<1x2x8x128xf32> to vector<2x8x128xf32>
    %c0_4 = arith.constant 0 : index
    %c0_5 = arith.constant 0 : index
    %c0_6 = arith.constant 0 : index
    %c0_7 = arith.constant 0 : index
    %9 = vector.load %arg4[%c0_4, %c0_5, %c0_6, %c0_7] : memref<1x2x8x128xf32, #tpu.memory_space<vmem>>, vector<1x2x8x128xf32>
    %10 = vector.shape_cast %8 : vector<2x8x128xf32> to vector<1x2x8x128xf32>
    %11 = arith.addf %9, %10 : vector<1x2x8x128xf32>
    %c0_8 = arith.constant 0 : index
    %c0_9 = arith.constant 0 : index
    %c0_10 = arith.constant 0 : index
    %c0_11 = arith.constant 0 : index
    %12 = vector.load %arg4[%c0_8, %c0_9, %c0_10, %c0_11] : memref<1x2x8x128xf32, #tpu.memory_space<vmem>>, vector<1x2x8x128xf32>
    tpu.vector_store %arg4[%c0_8, %c0_9, %c0_10, %c0_11], %11 {strides = array<i32>} : memref<1x2x8x128xf32, #tpu.memory_space<vmem>>, vector<1x2x8x128xf32>,
    return
  }
  func.func @transform_0(%arg0: i32, %arg1: i32) -> (i32, i32) {
    %c1_i32 = arith.constant 1 : i32
    %0 = arith.muli %arg0, %c1_i32 : i32
    %1 = arith.addi %0, %arg1 : i32
    %c0_i32 = arith.constant 0 : i32
    %c0_i32_0 = arith.constant 0 : i32
    return %1, %c0_i32 : i32, i32
  }
  func.func @transform_1(%arg0: i32, %arg1: i32) -> (i32, i32) {
    %c1_i32 = arith.constant 1 : i32
    %0 = arith.muli %arg0, %c1_i32 : i32
    %1 = arith.addi %0, %arg1 : i32
    %c0_i32 = arith.constant 0 : i32
    %c0_i32_0 = arith.constant 0 : i32
    return %1, %c0_i32 : i32, i32
  }
  func.func @transform_2(%arg0: i32, %arg1: i32) -> (i32, i32, i32, i32) {
    %c0_i32 = arith.constant 0 : i32
    %c0_i32_0 = arith.constant 0 : i32
    %c0_i32_1 = arith.constant 0 : i32
    %c0_i32_2 = arith.constant 0 : i32
    return %arg0, %c0_i32, %c0_i32_0, %c0_i32_1 : i32, i32, i32, i32
  }
}

</mosaic_0001>

<llo_original>
// kernel: tpu_custom_call.1
$region0: #{tpu_custom_call.1}
  #allocation0 [shape = 'u32[]', space=smem, size = 0x4, offset = 0x4, fixed_abs, tag = 'smem constant byte address 0x4 - core index']
  #allocation1 [shape = 'u32[144,128]{1,0:T(1,128)}', space=vmem, size = 0x12000, scoped, tag = 'internal scratch']
  %s0 = inlined_call_operand.hbm [shape: f32[16,128], index: 0, kind: input, shape index: {}]
  %s1 = inlined_call_operand.hbm [shape: f32[16,128], index: 1, kind: input, shape index: {}]
  %s2 = inlined_call_operand.hbm [shape: f32[1,2,8,128], index: 2, kind: output, shape index: {}]
  %s3 = sld [smem:[#allocation0]]
  $region30: #{tpu_custom_call.1} parent=0
    _
  %s5 = ssub.s32 1, %s3
  %s6 = scalar_select 0, %s5, %s3
  $region1: #{tpu_custom_call.1} parent=0
    #allocation2 [shape = 'u8[8192]{0}', space=vmem, size = 0x2000, scoped, tag = 'input window, operand 0, single buffered']
    #allocation3 [shape = 's32[1]{0}', space=sflag, size = 0x4, scoped, tag = 'scoped memory for tpu_custom_call.1']
    #allocation4 [shape = 's32[1]{0}', space=sflag, size = 0x4, scoped, tag = 'scoped memory for tpu_custom_call.1']
    #allocation5 [shape = 'u8[8192]{0}', space=vmem, size = 0x2000, scoped, tag = 'input window, operand 1, single buffered']
    #allocation6 [shape = 's32[1]{0}', space=sflag, size = 0x4, scoped, tag = 'scoped memory for tpu_custom_call.1']
    #allocation7 [shape = 'u8[8192]{0}', space=vmem, size = 0x2000, scoped, tag = 'output window, operand 0, single buffered']
    %7 = vsyncpa [#allocation3], 0
    %8 = vsyncpa [#allocation6], 0
    %9 = vsyncpa [#allocation4], 0
    // Predicated region
    $region2: #{tpu_custom_call.1} parent=1 // pred_check
      _
    $region3: #{tpu_custom_call.1} parent=1 // pred_check_branch
      %11 = sbr.rel (0) target = $region5
    $region4: #{tpu_custom_call.1} parent=1 // pred_region
      %s12 = sadd.s32 0, 0
      %s13 = smul.u32 2, %s12
      %s15 = ssub.s32 256, 256
      %16 = vsyncadd [#allocation3], %s15
      %s17 = smul.addr %s13, 128
      %s18 = scalar_lea.hbm %s0, %s17
      %s19 = sshll.u32 [#allocation2], 4
      %s20 = int_to_ptr.vmem [resolvable:$true] %s19
      %25 = dma.hbm_to_vmem [thread:$0]  %s18, 256, %s20, [#allocation3], 128, 128, 8
    $region5: #{tpu_custom_call.1} parent=1 // pred_fallthru
      _
    // Predicated region
    $region6: #{tpu_custom_call.1} parent=1 // pred_check
      _
    $region7: #{tpu_custom_call.1} parent=1 // pred_check_branch
      %27 = sbr.rel (0) target = $region9
    $region8: #{tpu_custom_call.1} parent=1 // pred_region
      %s28 = sadd.s32 0, 0
      %s29 = smul.u32 2, %s28
      %s31 = ssub.s32 256, 256
      %32 = vsyncadd [#allocation6], %s31
      %s33 = smul.addr %s29, 128
      %s34 = scalar_lea.hbm %s1, %s33
      %s35 = sshll.u32 [#allocation5], 4
      %s36 = int_to_ptr.vmem [resolvable:$true] %s35
      %41 = dma.hbm_to_vmem [thread:$0]  %s34, 256, %s36, [#allocation6], 128, 128, 8
    $region9: #{tpu_custom_call.1} parent=1 // pred_fallthru
      _
    // Predicated region
    $region10: #{tpu_custom_call.1} parent=1 // pred_check
      _
    $region11: #{tpu_custom_call.1} parent=1 // pred_check_branch
      %43 = sbr.rel (0) target = $region13
    $region12: #{tpu_custom_call.1} parent=1 // pred_region
      %44 = dma.done [#allocation3], 256
    $region13: #{tpu_custom_call.1} parent=1 // pred_fallthru
      _
    // Predicated region
    $region14: #{tpu_custom_call.1} parent=1 // pred_check
      _
    $region15: #{tpu_custom_call.1} parent=1 // pred_check_branch
      %46 = sbr.rel (0) target = $region17
    $region16: #{tpu_custom_call.1} parent=1 // pred_region
      %47 = dma.done [#allocation6], 256
    $region17: #{tpu_custom_call.1} parent=1 // pred_fallthru
      _
    %s48 = sadd.s32 0, 0
    %s49 = smul.u32 2, %s48
    %s50 = sadd.s32 0, 0
    %s51 = smul.u32 2, %s50
    %p52 = scmp.eq.s32.totalorder 0, 0
    // Predicated region
    $region18: #{tpu_custom_call.1} parent=1 // pred_check
      %p53 = pneg %p52
    $region19: #{tpu_custom_call.1} parent=1 // pred_check_branch
      %55 = sbr.rel (%p53) target = $region21
    $region20: #{tpu_custom_call.1} parent=1 // pred_region
      %56 = vst [vmem:[#allocation7] sm:$0xff] 0.0
      %57 = vst [vmem:[#allocation7 + $0x8] sm:$0xff] 0.0
    $region21: #{tpu_custom_call.1} parent=1 // pred_fallthru
      _
    %v58 = vld [vmem:[#allocation2] sm:$0xff]
    %v59 = vld [vmem:[#allocation2 + $0x8] sm:$0xff]
    %v60 = vld [vmem:[#allocation5] sm:$0xff]
    %v61 = vld [vmem:[#allocation5 + $0x8] sm:$0xff]
    %v62 = vsub.f32 %v58, %v60
    %v63 = vsub.f32 %v59, %v61
    %v64 = vmul.f32 %v62, %v62
    %v65 = vmul.f32 %v63, %v63
    %v66 = vadd.f32 %v64, 0.0
    %v67 = vadd.f32 %v65, 0.0
    %v68 = vld [vmem:[#allocation7] sm:$0xff]
    %v69 = vld [vmem:[#allocation7 + $0x8] sm:$0xff]
    %v70 = vadd.f32 %v68, %v66
    %v71 = vadd.f32 %v69, %v67
    %72 = vst [vmem:[#allocation7] sm:$0xff] %v70
    %73 = vst [vmem:[#allocation7 + $0x8] sm:$0xff] %v71
    // Predicated region
    $region22: #{tpu_custom_call.1} parent=1 // pred_check
      _
    $region23: #{tpu_custom_call.1} parent=1 // pred_check_branch
      %75 = sbr.rel (0) target = $region25
    $region24: #{tpu_custom_call.1} parent=1 // pred_region
      %s77 = ssub.s32 256, 256
      %78 = vsyncadd [#allocation4], %s77
      %s79 = sshll.u32 [#allocation7], 4
      %s80 = int_to_ptr.vmem [resolvable:$true] %s79
      %85 = dma.vmem_to_hbm [thread:$0]  %s80, 256, %s2, [#allocation4], 128, 128, 8
    $region25: #{tpu_custom_call.1} parent=1 // pred_fallthru
      _
    // Predicated region
    $region26: #{tpu_custom_call.1} parent=1 // pred_check
      _
    $region27: #{tpu_custom_call.1} parent=1 // pred_check_branch
      %87 = sbr.rel (0) target = $region29
    $region28: #{tpu_custom_call.1} parent=1 // pred_region
      %88 = dma.done [#allocation4], 256
    $region29: #{tpu_custom_call.1} parent=1 // pred_fallthru
      _
    %89 = vsyncpa [#allocation3], 1
    %90 = vsyncpa [#allocation6], 1
    %91 = vsyncpa [#allocation4], 1

</llo_original>
